<compile_context>
chip_gen: v7x
topology: tpu7x:2x2x1
jax: 0.10.0
libtpu: 0.0.40
codegen_flags: <defaults>
</compile_context>

<pallas_src>
import jax
import jax.numpy as jnp
from jax.experimental import pallas as pl
from jax.experimental.pallas import tpu as pltpu


def _round_up(x, m):
    return (x + m - 1) // m * m


def _num_tensorcores():
    """1 TC/chip on v5e/v6e, 2 on v7x. Conservative fallback = 1."""
    try:
        kind = jax.devices()[0].device_kind.lower()
        return 2 if "v7" in kind else 1
    except Exception:  # pragma: no cover
        return 1


def mlp_kernel(x_ref, w1_ref, b1_ref, w2_ref, b2_ref, w3_ref, b3_ref, o_ref):
    # x arrives in f32; cast to bf16 on the VPU (cheaper than a wrapper pass).
    x = x_ref[...].astype(jnp.bfloat16)
    # fc1 + ReLU (bf16 MXU operands, f32 accumulation, f32 epilogue)
    h1 = jnp.dot(x, w1_ref[...], preferred_element_type=jnp.float32)
    h1 = jnp.maximum(h1 + b1_ref[...], 0.0)
    # dropout1: identity in eval mode
    # fc2 + ReLU (bf16 LHS halves MXU staging traffic)
    h2 = jnp.dot(h1.astype(jnp.bfloat16), w2_ref[...],
                 preferred_element_type=jnp.float32)
    h2 = jnp.maximum(h2 + b2_ref[...], 0.0)
    # dropout2: identity in eval mode
    # fc3 (logits, lane-dense padded N)
    out = jnp.dot(h2.astype(jnp.bfloat16), w3_ref[...],
                  preferred_element_type=jnp.float32)
    o_ref[...] = (out + b3_ref[...]).astype(o_ref.dtype)


def pack_params(params):
    """One-time weight packing (do NOT call per forward).

    Takes torch-convention params: weight (out, in), bias (out,).
    Returns MXU-ready operands: weights transposed to (in, out) in bf16,
    fc3 weight/bias zero-padded to 128 output lanes, biases as (1, N) f32 rows.
    """
    hidden_dim = params["w1"].shape[0]
    half_dim = params["w2"].shape[0]
    num_classes = params["w3"].shape[0]
    cls_pad = _round_up(num_classes, 128)   # lane-dense logits block

    w1 = params["w1"].T.astype(jnp.bfloat16)                       # (in, hidden)
    w2 = params["w2"].T.astype(jnp.bfloat16)                       # (hidden, half)
    w3 = jnp.zeros((half_dim, cls_pad), jnp.bfloat16).at[:, :num_classes].set(
        params["w3"].T.astype(jnp.bfloat16))                       # (half, cls_pad)
    b1 = params["b1"].reshape(1, hidden_dim).astype(jnp.float32)
    b2 = params["b2"].reshape(1, half_dim).astype(jnp.float32)
    b3 = jnp.zeros((1, cls_pad), jnp.float32).at[:, :num_classes].set(
        params["b3"].astype(jnp.float32))

    return {"w1": w1, "b1": b1, "w2": w2, "b2": b2, "w3": w3, "b3": b3,
            "num_classes": num_classes}


def simple_classifier_forward(x, packed, *, block_b=None):
    """Fused 3-layer MLP forward. `packed` must come from pack_params()."""
    B, input_dim = x.shape
    hidden_dim = packed["w1"].shape[1]
    half_dim = packed["w2"].shape[1]
    cls_pad = packed["w3"].shape[1]
    num_classes = packed["num_classes"]

    # Batch tile: one grid step per TensorCore (v5e/v6e -> grid=(1,) at B<=512,
    # v7x -> even >=2-step grid), capped at 512 rows/step; bf16-sublane aligned.
    if block_b is None:
        num_tc = _num_tensorcores()
        block_b = min(512, _round_up((B + num_tc - 1) // num_tc, 16))
    block_b = max(16, min(_round_up(block_b, 16), _round_up(B, 16)))
    b_pad = _round_up(B, block_b)

    # Only pad the batch if needed (no-op for B % block_b == 0). x stays f32
    # with its natural 64-wide last dim; no 128-lane HBM padding pass.
    x_in = x if b_pad == B else jnp.pad(x, ((0, b_pad - B), (0, 0)))

    grid = (b_pad // block_b,)

    flops = 2 * b_pad * (input_dim * hidden_dim
                         + hidden_dim * half_dim
                         + half_dim * cls_pad)
    bytes_accessed = (x_in.size * 4
                      + (packed["w1"].size + packed["w2"].size
                         + packed["w3"].size) * 2
                      + (packed["b1"].size + packed["b2"].size
                         + packed["b3"].size) * 4
                      + b_pad * cls_pad * 4)

    out = pl.pallas_call(
        mlp_kernel,
        out_shape=jax.ShapeDtypeStruct((b_pad, cls_pad), jnp.float32),
        grid_spec=pltpu.PrefetchScalarGridSpec(
            num_scalar_prefetch=0,
            grid=grid,
            in_specs=[
                pl.BlockSpec((block_b, input_dim), lambda i: (i, 0)),      # x tile
                pl.BlockSpec((input_dim, hidden_dim), lambda i: (0, 0)),   # w1
                pl.BlockSpec((1, hidden_dim), lambda i: (0, 0)),           # b1
                pl.BlockSpec((hidden_dim, half_dim), lambda i: (0, 0)),    # w2
                pl.BlockSpec((1, half_dim), lambda i: (0, 0)),             # b2
                pl.BlockSpec((half_dim, cls_pad), lambda i: (0, 0)),       # w3
                pl.BlockSpec((1, cls_pad), lambda i: (0, 0)),              # b3
            ],
            out_specs=pl.BlockSpec((block_b, cls_pad), lambda i: (i, 0)),
        ),
        compiler_params=pltpu.CompilerParams(
            dimension_semantics=("parallel",),
        ),
        cost_estimate=pl.CostEstimate(
            flops=flops, transcendentals=0, bytes_accessed=bytes_accessed),
    )(x_in, packed["w1"], packed["b1"], packed["w2"], packed["b2"],
      packed["w3"], packed["b3"])

    # Strip batch / class padding.
    return out[:B, :num_classes].astype(x.dtype)


def init_params(key, input_dim, num_classes, hidden_dim=256):
    """Deterministic init matching nn.Linear shapes: weight (out, in), bias (out,)."""
    ks = jax.random.split(key, 6)
    half_dim = hidden_dim // 2

    def lin_init(kw, kb, fan_in, fan_out):
        bound = 1.0 / jnp.sqrt(fan_in)
        w = jax.random.uniform(kw, (fan_out, fan_in), jnp.float32, -bound, bound)
        b = jax.random.uniform(kb, (fan_out,), jnp.float32, -bound, bound)
        return w, b

    w1, b1 = lin_init(ks[0], ks[1], input_dim, hidden_dim)
    w2, b2 = lin_init(ks[2], ks[3], hidden_dim, half_dim)
    w3, b3 = lin_init(ks[4], ks[5], half_dim, num_classes)
    return {"w1": w1, "b1": b1, "w2": w2, "b2": b2, "w3": w3, "b3": b3}


def reference_forward(x, params):
    # Pure-JAX f32 reference matching PyTorch eval-mode forward.
    h1 = jnp.maximum(x @ params["w1"].T + params["b1"], 0.0)
    h2 = jnp.maximum(h1 @ params["w2"].T + params["b2"], 0.0)
    return h2 @ params["w3"].T + params["b3"]


if __name__ == "__main__":
    key = jax.random.PRNGKey(0)
    k_x, k_p = jax.random.split(key)

    B, INPUT_DIM, NUM_CLASSES, HIDDEN_DIM = 256, 64, 10, 256

    x = jax.random.normal(k_x, (B, INPUT_DIM), jnp.float32)
    params = init_params(k_p, INPUT_DIM, NUM_CLASSES, HIDDEN_DIM)

    # One-time weight packing (transpose / bf16 / lane padding), reused across calls.
    packed = pack_params(params)

    out = simple_classifier_forward(x, packed)
    out = jax.block_until_ready(out)

    ref = reference_forward(x, params)
    assert out.shape == (B, NUM_CLASSES)
    # bf16 matmul operands with f32 accumulation -> relaxed tolerance vs f32 ref.
    assert jnp.allclose(out, ref, atol=5e-2, rtol=5e-2), "mismatch vs reference"

    # TODO(synk): training-mode Dropout(0.5) would need pltpu.prng_seed /
    # prng_random_bits masking inside the kernel; eval mode is identity.
    print("KERNEL_OK")
</pallas_src>

<mosaic_0001>
module attributes {stable_mosaic.version = 11 : i64} {
  func.func @mlp_kernel(%arg0: i32, %arg1: memref<256x64xf32, #tpu.memory_space<vmem>>, %arg2: memref<64x256xbf16, #tpu.memory_space<vmem>>, %arg3: memref<1x256xf32, #tpu.memory_space<vmem>>, %arg4: memref<256x128xbf16, #tpu.memory_space<vmem>>, %arg5: memref<1x128xf32, #tpu.memory_space<vmem>>, %arg6: memref<128x128xbf16, #tpu.memory_space<vmem>>, %arg7: memref<1x128xf32, #tpu.memory_space<vmem>>, %arg8: memref<256x128xf32, #tpu.memory_space<vmem>>) attributes {dimension_semantics = [#tpu.dimension_semantics<parallel>], iteration_bounds = array<i64: 1>, scalar_prefetch = 0 : i64, scratch_operands = 0 : i64, tpu.core_type = #tpu.core_type<tc>, window_params = [{transform_indices = @transform_0, window_bounds = array<i64: 256, 64>}, {pipeline_mode = #tpu.pipeline_mode<synchronous>, transform_indices = @transform_1, window_bounds = array<i64: 64, 256>}, {pipeline_mode = #tpu.pipeline_mode<synchronous>, transform_indices = @transform_2, window_bounds = array<i64: 1, 256>}, {pipeline_mode = #tpu.pipeline_mode<synchronous>, transform_indices = @transform_3, window_bounds = array<i64: 256, 128>}, {pipeline_mode = #tpu.pipeline_mode<synchronous>, transform_indices = @transform_4, window_bounds = array<i64: 1, 128>}, {pipeline_mode = #tpu.pipeline_mode<synchronous>, transform_indices = @transform_5, window_bounds = array<i64: 128, 128>}, {pipeline_mode = #tpu.pipeline_mode<synchronous>, transform_indices = @transform_6, window_bounds = array<i64: 1, 128>}, {transform_indices = @transform_7, window_bounds = array<i64: 256, 128>}]} {
    %c0 = arith.constant 0 : index
    %c0_0 = arith.constant 0 : index
    %0 = vector.load %arg1[%c0, %c0_0] : memref<256x64xf32, #tpu.memory_space<vmem>>, vector<256x64xf32>
    %1 = arith.truncf %0 : vector<256x64xf32> to vector<256x64xbf16>
    %c0_1 = arith.constant 0 : index
    %c0_2 = arith.constant 0 : index
    %2 = vector.load %arg2[%c0_1, %c0_2] : memref<64x256xbf16, #tpu.memory_space<vmem>>, vector<64x256xbf16>
    %cst = arith.constant dense<0.000000e+00> : vector<256x256xf32>
    %3 = tpu.matmul %1, %2, %cst {dimension_numbers = #tpu.dot_dimension_numbers<[1], [0], [0], [1], [0, 0, 1, 1], [], []>} : vector<256x64xbf16>, vector<64x256xbf16>, vector<256x256xf32> -> vector<256x256xf32>
    %c0_3 = arith.constant 0 : index
    %c0_4 = arith.constant 0 : index
    %4 = vector.load %arg3[%c0_3, %c0_4] : memref<1x256xf32, #tpu.memory_space<vmem>>, vector<1x256xf32>
    %5 = vector.broadcast %4 : vector<1x256xf32> to vector<256x256xf32>
    %6 = arith.addf %3, %5 : vector<256x256xf32>
    %cst_5 = arith.constant 0.000000e+00 : f32
    %7 = vector.broadcast %cst_5 : f32 to vector<256x256xf32>
    %8 = arith.maximumf %6, %7 : vector<256x256xf32>
    %9 = arith.truncf %8 : vector<256x256xf32> to vector<256x256xbf16>
    %c0_6 = arith.constant 0 : index
    %c0_7 = arith.constant 0 : index
    %10 = vector.load %arg4[%c0_6, %c0_7] : memref<256x128xbf16, #tpu.memory_space<vmem>>, vector<256x128xbf16>
    %cst_8 = arith.constant dense<0.000000e+00> : vector<256x128xf32>
    %11 = tpu.matmul %9, %10, %cst_8 {dimension_numbers = #tpu.dot_dimension_numbers<[1], [0], [0], [1], [0, 0, 1, 1], [], []>} : vector<256x256xbf16>, vector<256x128xbf16>, vector<256x128xf32> -> vector<256x128xf32>
    %c0_9 = arith.constant 0 : index
    %c0_10 = arith.constant 0 : index
    %12 = vector.load %arg5[%c0_9, %c0_10] : memref<1x128xf32, #tpu.memory_space<vmem>>, vector<1x128xf32>
    %13 = vector.broadcast %12 : vector<1x128xf32> to vector<256x128xf32>
    %14 = arith.addf %11, %13 : vector<256x128xf32>
    %cst_11 = arith.constant 0.000000e+00 : f32
    %15 = vector.broadcast %cst_11 : f32 to vector<256x128xf32>
    %16 = arith.maximumf %14, %15 : vector<256x128xf32>
    %17 = arith.truncf %16 : vector<256x128xf32> to vector<256x128xbf16>
    %c0_12 = arith.constant 0 : index
    %c0_13 = arith.constant 0 : index
    %18 = vector.load %arg6[%c0_12, %c0_13] : memref<128x128xbf16, #tpu.memory_space<vmem>>, vector<128x128xbf16>
    %cst_14 = arith.constant dense<0.000000e+00> : vector<256x128xf32>
    %19 = tpu.matmul %17, %18, %cst_14 {dimension_numbers = #tpu.dot_dimension_numbers<[1], [0], [0], [1], [0, 0, 1, 1], [], []>} : vector<256x128xbf16>, vector<128x128xbf16>, vector<256x128xf32> -> vector<256x128xf32>
    %c0_15 = arith.constant 0 : index
    %c0_16 = arith.constant 0 : index
    %20 = vector.load %arg7[%c0_15, %c0_16] : memref<1x128xf32, #tpu.memory_space<vmem>>, vector<1x128xf32>
    %21 = vector.broadcast %20 : vector<1x128xf32> to vector<256x128xf32>
    %22 = arith.addf %19, %21 : vector<256x128xf32>
    %c0_17 = arith.constant 0 : index
    %c0_18 = arith.constant 0 : index
    %23 = vector.load %arg8[%c0_17, %c0_18] : memref<256x128xf32, #tpu.memory_space<vmem>>, vector<256x128xf32>
    tpu.vector_store %arg8[%c0_17, %c0_18], %22 {strides = array<i32>} : memref<256x128xf32, #tpu.memory_space<vmem>>, vector<256x128xf32>,
    return
  }
  func.func @transform_0(%arg0: i32) -> (i32, i32) {
    %c0_i32 = arith.constant 0 : i32
    %c0_i32_0 = arith.constant 0 : i32
    return %arg0, %c0_i32 : i32, i32
  }
  func.func @transform_1(%arg0: i32) -> (i32, i32) {
    %c0_i32 = arith.constant 0 : i32
    %c0_i32_0 = arith.constant 0 : i32
    %c0_i32_1 = arith.constant 0 : i32
    return %c0_i32, %c0_i32_0 : i32, i32
  }
  func.func @transform_2(%arg0: i32) -> (i32, i32) {
    %c0_i32 = arith.constant 0 : i32
    %c0_i32_0 = arith.constant 0 : i32
    %c0_i32_1 = arith.constant 0 : i32
    return %c0_i32, %c0_i32_0 : i32, i32
  }
  func.func @transform_3(%arg0: i32) -> (i32, i32) {
    %c0_i32 = arith.constant 0 : i32
    %c0_i32_0 = arith.constant 0 : i32
    %c0_i32_1 = arith.constant 0 : i32
    return %c0_i32, %c0_i32_0 : i32, i32
  }
  func.func @transform_4(%arg0: i32) -> (i32, i32) {
    %c0_i32 = arith.constant 0 : i32
    %c0_i32_0 = arith.constant 0 : i32
    %c0_i32_1 = arith.constant 0 : i32
    return %c0_i32, %c0_i32_0 : i32, i32
  }
  func.func @transform_5(%arg0: i32) -> (i32, i32) {
    %c0_i32 = arith.constant 0 : i32
    %c0_i32_0 = arith.constant 0 : i32
    %c0_i32_1 = arith.constant 0 : i32
    return %c0_i32, %c0_i32_0 : i32, i32
  }
  func.func @transform_6(%arg0: i32) -> (i32, i32) {
    %c0_i32 = arith.constant 0 : i32
    %c0_i32_0 = arith.constant 0 : i32
    %c0_i32_1 = arith.constant 0 : i32
    return %c0_i32, %c0_i32_0 : i32, i32
  }
  func.func @transform_7(%arg0: i32) -> (i32, i32) {
    %c0_i32 = arith.constant 0 : i32
    %c0_i32_0 = arith.constant 0 : i32
    return %arg0, %c0_i32 : i32, i32
  }
}

</mosaic_0001>

<llo_original>
// kernel: tpu_custom_call.1
$region0: #{tpu_custom_call.1}
  #allocation0 [shape = 'u32[]', space=smem, size = 0x4, offset = 0x4, fixed_abs, tag = 'smem constant byte address 0x4 - core index']
  #allocation1 [shape = 'u32[144,128]{1,0:T(1,128)}', space=vmem, size = 0x12000, scoped, tag = 'internal scratch']
  %s0 = inlined_call_operand.vmem [shape: f32[256,64], index: 0, kind: input, shape index: {}]
  %s1 = inlined_call_operand.vmem [shape: bf16[64,256], index: 1, kind: input, shape index: {}]
  %s2 = inlined_call_operand.vmem [shape: f32[1,256], index: 2, kind: input, shape index: {}]
  %s3 = inlined_call_operand.vmem [shape: bf16[256,128], index: 3, kind: input, shape index: {}]
  %s4 = inlined_call_operand.vmem [shape: f32[1,128], index: 4, kind: input, shape index: {}]
  %s5 = inlined_call_operand.vmem [shape: bf16[128,128], index: 5, kind: input, shape index: {}]
  %s6 = inlined_call_operand.vmem [shape: f32[1,128], index: 6, kind: input, shape index: {}]
  %s7 = inlined_call_operand.hbm [shape: f32[256,128], index: 7, kind: output, shape index: {}]
  %s8 = sld [smem:[#allocation0]]
  $region38: #{tpu_custom_call.1} parent=0
    _
  %s10 = ssub.s32 1, %s8
  %s11 = scalar_select 0, %s10, %s8
  $region1: #{tpu_custom_call.1} parent=0
    #allocation2 [shape = 'u8[131072]{0}', space=vmem, size = 0x20000, scoped, tag = 'output window, operand 0, single buffered']
    #allocation3 [shape = 's32[1]{0}', space=sflag, size = 0x4, scoped, tag = 'scoped memory for tpu_custom_call.1']
    %12 = vsyncpa [#allocation3], 0
    // Predicated region
    $region2: #{tpu_custom_call.1} parent=1 // pred_check
      _
    $region3: #{tpu_custom_call.1} parent=1 // pred_check_branch
      %14 = sbr.rel (0) target = $region5
    $region4: #{tpu_custom_call.1} parent=1 // pred_region
      _
    $region5: #{tpu_custom_call.1} parent=1 // pred_fallthru
      _
    // Predicated region
    $region6: #{tpu_custom_call.1} parent=1 // pred_check
      _
    $region7: #{tpu_custom_call.1} parent=1 // pred_check_branch
      %16 = sbr.rel (0) target = $region9
    $region8: #{tpu_custom_call.1} parent=1 // pred_region
      _
    $region9: #{tpu_custom_call.1} parent=1 // pred_fallthru
      _
    // Predicated region
    $region10: #{tpu_custom_call.1} parent=1 // pred_check
      _
    $region11: #{tpu_custom_call.1} parent=1 // pred_check_branch
      %18 = sbr.rel (0) target = $region13
    $region12: #{tpu_custom_call.1} parent=1 // pred_region
      _
    $region13: #{tpu_custom_call.1} parent=1 // pred_fallthru
      _
    // Predicated region
    $region14: #{tpu_custom_call.1} parent=1 // pred_check
      _
    $region15: #{tpu_custom_call.1} parent=1 // pred_check_branch
      %20 = sbr.rel (0) target = $region17
    $region16: #{tpu_custom_call.1} parent=1 // pred_region
      _
    $region17: #{tpu_custom_call.1} parent=1 // pred_fallthru
      _
    // Predicated region
    $region18: #{tpu_custom_call.1} parent=1 // pred_check
      _
    $region19: #{tpu_custom_call.1} parent=1 // pred_check_branch
      %22 = sbr.rel (0) target = $region21
    $region20: #{tpu_custom_call.1} parent=1 // pred_region
      _
    $region21: #{tpu_custom_call.1} parent=1 // pred_fallthru
      _
    // Predicated region
    $region22: #{tpu_custom_call.1} parent=1 // pred_check
      _
    $region23: #{tpu_custom_call.1} parent=1 // pred_check_branch
      %24 = sbr.rel (0) target = $region25
    $region24: #{tpu_custom_call.1} parent=1 // pred_region
      _
    $region25: #{tpu_custom_call.1} parent=1 // pred_fallthru
      _
    // Predicated region
    $region26: #{tpu_custom_call.1} parent=1 // pred_check
      _
    $region27: #{tpu_custom_call.1} parent=1 // pred_check_branch
      %26 = sbr.rel (0) target = $region29
    $region28: #{tpu_custom_call.1} parent=1 // pred_region
      _
    $region29: #{tpu_custom_call.1} parent=1 // pred_fallthru
      _
    %v28 = vld [vmem:[%s0] sm:$0xff]
    %v29 = vld [vmem:[%s0 + $0x8] sm:$0xff]
    %v30 = vld [vmem:[%s0 + $0x10] sm:$0xff]
    %v31 = vld [vmem:[%s0 + $0x18] sm:$0xff]
    %v32 = vld [vmem:[%s0 + $0x20] sm:$0xff]
    %v33 = vld [vmem:[%s0 + $0x28] sm:$0xff]
    %v34 = vld [vmem:[%s0 + $0x30] sm:$0xff]
    %v35 = vld [vmem:[%s0 + $0x38] sm:$0xff]
    %v36 = vld [vmem:[%s0 + $0x40] sm:$0xff]
    %v37 = vld [vmem:[%s0 + $0x48] sm:$0xff]
    %v38 = vld [vmem:[%s0 + $0x50] sm:$0xff]
    %v39 = vld [vmem:[%s0 + $0x58] sm:$0xff]
    %v40 = vld [vmem:[%s0 + $0x60] sm:$0xff]
    %v41 = vld [vmem:[%s0 + $0x68] sm:$0xff]
    %v42 = vld [vmem:[%s0 + $0x70] sm:$0xff]
    %v43 = vld [vmem:[%s0 + $0x78] sm:$0xff]
    %v44 = vld [vmem:[%s0 + $0x80] sm:$0xff]
    %v45 = vld [vmem:[%s0 + $0x88] sm:$0xff]
    %v46 = vld [vmem:[%s0 + $0x90] sm:$0xff]
    %v47 = vld [vmem:[%s0 + $0x98] sm:$0xff]
    %v48 = vld [vmem:[%s0 + $0xa0] sm:$0xff]
    %v49 = vld [vmem:[%s0 + $0xa8] sm:$0xff]
    %v50 = vld [vmem:[%s0 + $0xb0] sm:$0xff]
    %v51 = vld [vmem:[%s0 + $0xb8] sm:$0xff]
    %v52 = vld [vmem:[%s0 + $0xc0] sm:$0xff]
    %v53 = vld [vmem:[%s0 + $0xc8] sm:$0xff]
    %v54 = vld [vmem:[%s0 + $0xd0] sm:$0xff]
    %v55 = vld [vmem:[%s0 + $0xd8] sm:$0xff]
    %v56 = vld [vmem:[%s0 + $0xe0] sm:$0xff]
    %v57 = vld [vmem:[%s0 + $0xe8] sm:$0xff]
    %v58 = vld [vmem:[%s0 + $0xf0] sm:$0xff]
    %v59 = vld [vmem:[%s0 + $0xf8] sm:$0xff]
    %v60 = vpack.c.bf16 %v29, %v28
    %v61 = vpack.c.bf16 %v31, %v30
    %v62 = vpack.c.bf16 %v33, %v32
    %v63 = vpack.c.bf16 %v35, %v34
    %v64 = vpack.c.bf16 %v37, %v36
    %v65 = vpack.c.bf16 %v39, %v38
    %v66 = vpack.c.bf16 %v41, %v40
    %v67 = vpack.c.bf16 %v43, %v42
    %v68 = vpack.c.bf16 %v45, %v44
    %v69 = vpack.c.bf16 %v47, %v46
    %v70 = vpack.c.bf16 %v49, %v48
    %v71 = vpack.c.bf16 %v51, %v50
    %v72 = vpack.c.bf16 %v53, %v52
    %v73 = vpack.c.bf16 %v55, %v54
    %v74 = vpack.c.bf16 %v57, %v56
    %v75 = vpack.c.bf16 %v59, %v58
    %v76 = vld [vmem:[%s1] sm:$0xff]
    %v77 = vld [vmem:[%s1 + $0x8] sm:$0xff]
    %v78 = vld [vmem:[%s1 + $0x10] sm:$0xff]
    %v79 = vld [vmem:[%s1 + $0x18] sm:$0xff]
    %v80 = vld [vmem:[%s1 + $0x20] sm:$0xff]
    %v81 = vld [vmem:[%s1 + $0x28] sm:$0xff]
    %v82 = vld [vmem:[%s1 + $0x30] sm:$0xff]
    %v83 = vld [vmem:[%s1 + $0x38] sm:$0xff]
    %v84 = vld [vmem:[%s2] sm:$0x3]
    %v86 = vlaneseq
    %v87 = vshrl.u32 %v86, 7
    %v88 = vsub.s32 0, %v87
    %v89 = vrot.slane %v84, %v88
    %v90 = vlaneseq
    %v91 = vshrl.u32 %v90, 7
    %v92 = vsub.s32 1, %v91
    %v93 = vrot.slane %v84, %v92
    %v104 = vunpack.c.l.b16 %v76
    %v105 = vunpack.c.h.b16 %v76
    %v106 = vunpack.c.l.b16 %v77
    %v107 = vunpack.c.h.b16 %v77
    %v108 = vunpack.c.l.b16 %v78
    %v109 = vunpack.c.h.b16 %v78
    %v110 = vunpack.c.l.b16 %v79
    %v111 = vunpack.c.h.b16 %v79
    %v112 = vunpack.c.l.b16 %v80
    %v113 = vunpack.c.h.b16 %v80
    %v114 = vunpack.c.l.b16 %v81
    %v115 = vunpack.c.h.b16 %v81
    %v116 = vunpack.c.l.b16 %v82
    %v117 = vunpack.c.h.b16 %v82
    %v118 = vunpack.c.l.b16 %v83
    %v119 = vunpack.c.h.b16 %v83
    %v120 = vpack.c.b16 %v106, %v104
    %v121 = vpack.c.b16 %v107, %v105
    %v122 = vpack.c.b16 %v110, %v108
    %v123 = vpack.c.b16 %v111, %v109
    %v124 = vpack.c.b16 %v114, %v112
    %v125 = vpack.c.b16 %v115, %v113
    %v126 = vpack.c.b16 %v118, %v116
    %v127 = vpack.c.b16 %v119, %v117
    %vm136 = vcmask 523264
    %v138 = vsel %vm136, %v60, 0
    %v141 = vsel %vm136, %v61, 0
    %v144 = vsel %vm136, %v62, 0
    %v147 = vsel %vm136, %v63, 0
    %v150 = vsel %vm136, %v64, 0
    %v153 = vsel %vm136, %v65, 0
    %v156 = vsel %vm136, %v66, 0
    %v159 = vsel %vm136, %v67, 0
    %v162 = vsel %vm136, %v68, 0
    %v165 = vsel %vm136, %v69, 0
    %v168 = vsel %vm136, %v70, 0
    %v171 = vsel %vm136, %v71, 0
    %v174 = vsel %vm136, %v72, 0
    %v177 = vsel %vm136, %v73, 0
    %v180 = vsel %vm136, %v74, 0
    %v183 = vsel %vm136, %v75, 0
    %185 = vmatprep.subr.bf16.mxu0 %v121
    %186 = vmatpush1.bf16.msra.mxu0 %v120
    %187 = vmatprep.subr.bf16.mxu0 %v123
    %188 = vmatpush1.bf16.msra.mxu0 %v122
    %189 = vmatprep.subr.bf16.mxu0 %v125
    %190 = vmatpush1.bf16.msra.mxu0 %v124
    %191 = vmatprep.subr.bf16.mxu0 %v127
    %192 = vmatpush1.bf16.msra.mxu0 %v126
    %193 = vmatprep.subr.bf16.mxu0 0
    %194 = vmatpush1.bf16.msra.mxu0 0
    %195 = vmatprep.subr.bf16.mxu0 0
    %196 = vmatpush1.bf16.msra.mxu0 0
    %197 = vmatprep.subr.bf16.mxu0 0
    %198 = vmatpush1.bf16.msra.mxu0 0
    %199 = vmatprep.subr.bf16.mxu0 0
    %200 = vmatpush1.bf16.msra.mxu0 0
    %201 = vmatprep.subr.bf16.mxu0 0
    %202 = vmatpush1.bf16.msra.mxu0 0
    %203 = vmatprep.subr.bf16.mxu0 0
    %204 = vmatpush1.bf16.msra.mxu0 0
    %205 = vmatprep.subr.bf16.mxu0 0
    %206 = vmatpush1.bf16.msra.mxu0 0
    %207 = vmatprep.subr.bf16.mxu0 0
    %208 = vmatpush1.bf16.msra.mxu0 0
    %209 = vmatprep.subr.bf16.mxu0 0
    %210 = vmatpush1.bf16.msra.mxu0 0
    %211 = vmatprep.subr.bf16.mxu0 0
    %212 = vmatpush1.bf16.msra.mxu0 0
    %213 = vmatprep.subr.bf16.mxu0 0
    %214 = vmatpush1.bf16.msra.mxu0 0
    %215 = vmatprep.subr.bf16.mxu0 0
    %216 = vmatpush1.bf16.msra.mxu0 0
    %217 = vmatprep.mubr.bf16.mxu0 0
    %218 = vmatmul.mubr.bf16.gmra.mrb[0].mxu0 %v138
    %v219 = vpop.f32.mrb[0].mxu0
    %v220 = vadd.f32 %v89, %v219
    %v221 = vpop.f32.mrb[0].mxu0
    %v222 = vadd.f32 %v93, %v221
    %v223 = vpop.f32.mrb[0].mxu0
    %v224 = vadd.f32 %v89, %v223
    %v225 = vpop.f32.mrb[0].mxu0
    %v226 = vadd.f32 %v93, %v225
    %227 = vmatprep.mubr.bf16.mxu0 0
    %228 = vmatmul.mubr.bf16.gmra.mrb[0].mxu0 %v141
    %v229 = vpop.f32.mrb[0].mxu0
    %v230 = vadd.f32 %v89, %v229
    %v231 = vpop.f32.mrb[0].mxu0
    %v232 = vadd.f32 %v93, %v231
    %v233 = vpop.f32.mrb[0].mxu0
    %v234 = vadd.f32 %v89, %v233
    %v235 = vpop.f32.mrb[0].mxu0
    %v236 = vadd.f32 %v93, %v235
    %237 = vmatprep.mubr.bf16.mxu0 0
    %238 = vmatmul.mubr.bf16.gmra.mrb[0].mxu0 %v144
    %v239 = vpop.f32.mrb[0].mxu0
    %v240 = vadd.f32 %v89, %v239
    %v241 = vpop.f32.mrb[0].mxu0
    %v242 = vadd.f32 %v93, %v241
    %v243 = vpop.f32.mrb[0].mxu0
    %v244 = vadd.f32 %v89, %v243
    %v245 = vpop.f32.mrb[0].mxu0
    %v246 = vadd.f32 %v93, %v245
    %247 = vmatprep.mubr.bf16.mxu0 0
    %248 = vmatmul.mubr.bf16.gmra.mrb[0].mxu0 %v147
    %v249 = vpop.f32.mrb[0].mxu0
    %v250 = vadd.f32 %v89, %v249
    %v251 = vpop.f32.mrb[0].mxu0
    %v252 = vadd.f32 %v93, %v251
    %v253 = vpop.f32.mrb[0].mxu0
    %v254 = vadd.f32 %v89, %v253
    %v255 = vpop.f32.mrb[0].mxu0
    %v256 = vadd.f32 %v93, %v255
    %257 = vmatprep.mubr.bf16.mxu0 0
    %258 = vmatmul.mubr.bf16.gmra.mrb[0].mxu0 %v150
    %v259 = vpop.f32.mrb[0].mxu0
    %v260 = vadd.f32 %v89, %v259
    %v261 = vpop.f32.mrb[0].mxu0
    %v262 = vadd.f32 %v93, %v261
    %v263 = vpop.f32.mrb[0].mxu0
    %v264 = vadd.f32 %v89, %v263
    %v265 = vpop.f32.mrb[0].mxu0
    %v266 = vadd.f32 %v93, %v265
    %267 = vmatprep.mubr.bf16.mxu0 0
    %268 = vmatmul.mubr.bf16.gmra.mrb[0].mxu0 %v153
    %v269 = vpop.f32.mrb[0].mxu0
    %v270 = vadd.f32 %v89, %v269
    %v271 = vpop.f32.mrb[0].mxu0
    %v272 = vadd.f32 %v93, %v271
    %v273 = vpop.f32.mrb[0].mxu0
    %v274 = vadd.f32 %v89, %v273
    %v275 = vpop.f32.mrb[0].mxu0
    %v276 = vadd.f32 %v93, %v275
    %277 = vmatprep.mubr.bf16.mxu0 0
    %278 = vmatmul.mubr.bf16.gmra.mrb[0].mxu0 %v156
    %v279 = vpop.f32.mrb[0].mxu0
    %v280 = vadd.f32 %v89, %v279
    %v281 = vpop.f32.mrb[0].mxu0
    %v282 = vadd.f32 %v93, %v281
    %v283 = vpop.f32.mrb[0].mxu0
    %v284 = vadd.f32 %v89, %v283
    %v285 = vpop.f32.mrb[0].mxu0
    %v286 = vadd.f32 %v93, %v285
    %287 = vmatprep.mubr.bf16.mxu0 0
    %288 = vmatmul.mubr.bf16.gmra.mrb[0].mxu0 %v159
    %v289 = vpop.f32.mrb[0].mxu0
    %v290 = vadd.f32 %v89, %v289
    %v291 = vpop.f32.mrb[0].mxu0
    %v292 = vadd.f32 %v93, %v291
    %v293 = vpop.f32.mrb[0].mxu0
    %v294 = vadd.f32 %v89, %v293
    %v295 = vpop.f32.mrb[0].mxu0
    %v296 = vadd.f32 %v93, %v295
    %297 = vmatprep.mubr.bf16.mxu0 0
    %298 = vmatmul.mubr.bf16.gmra.mrb[0].mxu0 %v162
    %v299 = vpop.f32.mrb[0].mxu0
    %v300 = vadd.f32 %v89, %v299
    %v301 = vpop.f32.mrb[0].mxu0
    %v302 = vadd.f32 %v93, %v301
    %v303 = vpop.f32.mrb[0].mxu0
    %v304 = vadd.f32 %v89, %v303
    %v305 = vpop.f32.mrb[0].mxu0
    %v306 = vadd.f32 %v93, %v305
    %307 = vmatprep.mubr.bf16.mxu0 0
    %308 = vmatmul.mubr.bf16.gmra.mrb[0].mxu0 %v165
    %v309 = vpop.f32.mrb[0].mxu0
    %v310 = vadd.f32 %v89, %v309
    %v311 = vpop.f32.mrb[0].mxu0
    %v312 = vadd.f32 %v93, %v311
    %v313 = vpop.f32.mrb[0].mxu0
    %v314 = vadd.f32 %v89, %v313
    %v315 = vpop.f32.mrb[0].mxu0
    %v316 = vadd.f32 %v93, %v315
    %317 = vmatprep.mubr.bf16.mxu0 0
    %318 = vmatmul.mubr.bf16.gmra.mrb[0].mxu0 %v168
    %v319 = vpop.f32.mrb[0].mxu0
    %v320 = vadd.f32 %v89, %v319
    %v321 = vpop.f32.mrb[0].mxu0
    %v322 = vadd.f32 %v93, %v321
    %v323 = vpop.f32.mrb[0].mxu0
    %v324 = vadd.f32 %v89, %v323
    %v325 = vpop.f32.mrb[0].mxu0
    %v326 = vadd.f32 %v93, %v325
    %327 = vmatprep.mubr.bf16.mxu0 0
    %328 = vmatmul.mubr.bf16.gmra.mrb[0].mxu0 %v171
    %v329 = vpop.f32.mrb[0].mxu0
    %v330 = vadd.f32 %v89, %v329
    %v331 = vpop.f32.mrb[0].mxu0
    %v332 = vadd.f32 %v93, %v331
    %v333 = vpop.f32.mrb[0].mxu0
    %v334 = vadd.f32 %v89, %v333
    %v335 = vpop.f32.mrb[0].mxu0
    %v336 = vadd.f32 %v93, %v335
    %337 = vmatprep.mubr.bf16.mxu0 0
    %338 = vmatmul.mubr.bf16.gmra.mrb[0].mxu0 %v174
    %v339 = vpop.f32.mrb[0].mxu0
    %v340 = vadd.f32 %v89, %v339
    %v341 = vpop.f32.mrb[0].mxu0
    %v342 = vadd.f32 %v93, %v341
    %v343 = vpop.f32.mrb[0].mxu0
    %v344 = vadd.f32 %v89, %v343
    %v345 = vpop.f32.mrb[0].mxu0
    %v346 = vadd.f32 %v93, %v345
    %347 = vmatprep.mubr.bf16.mxu0 0
    %348 = vmatmul.mubr.bf16.gmra.mrb[0].mxu0 %v177
    %v349 = vpop.f32.mrb[0].mxu0
    %v350 = vadd.f32 %v89, %v349
    %v351 = vpop.f32.mrb[0].mxu0
    %v352 = vadd.f32 %v93, %v351
    %v353 = vpop.f32.mrb[0].mxu0
    %v354 = vadd.f32 %v89, %v353
    %v355 = vpop.f32.mrb[0].mxu0
    %v356 = vadd.f32 %v93, %v355
    %357 = vmatprep.mubr.bf16.mxu0 0
    %358 = vmatmul.mubr.bf16.gmra.mrb[0].mxu0 %v180
    %v359 = vpop.f32.mrb[0].mxu0
    %v360 = vadd.f32 %v89, %v359
    %v361 = vpop.f32.mrb[0].mxu0
    %v362 = vadd.f32 %v93, %v361
    %v363 = vpop.f32.mrb[0].mxu0
    %v364 = vadd.f32 %v89, %v363
    %v365 = vpop.f32.mrb[0].mxu0
    %v366 = vadd.f32 %v93, %v365
    %367 = vmatprep.mubr.bf16.mxu0 0
    %368 = vmatmul.mubr.bf16.gmra.mrb[0].mxu0 %v183
    %v369 = vpop.f32.mrb[0].mxu0
    %v370 = vadd.f32 %v89, %v369
    %v371 = vpop.f32.mrb[0].mxu0
    %v372 = vadd.f32 %v93, %v371
    %v373 = vpop.f32.mrb[0].mxu0
    %v374 = vadd.f32 %v89, %v373
    %v375 = vpop.f32.mrb[0].mxu0
    %v376 = vadd.f32 %v93, %v375
    %377 = vdwg.mxu0
    %v378 = vmax.f32 %v220, 0.0
    %v379 = vmax.f32 %v222, 0.0
    %v380 = vmax.f32 %v224, 0.0
    %v381 = vmax.f32 %v226, 0.0
    %v382 = vmax.f32 %v230, 0.0
    %v383 = vmax.f32 %v232, 0.0
    %v384 = vmax.f32 %v234, 0.0
    %v385 = vmax.f32 %v236, 0.0
    %v386 = vmax.f32 %v240, 0.0
    %v387 = vmax.f32 %v242, 0.0
    %v388 = vmax.f32 %v244, 0.0
    %v389 = vmax.f32 %v246, 0.0
    %v390 = vmax.f32 %v250, 0.0
    %v391 = vmax.f32 %v252, 0.0
    %v392 = vmax.f32 %v254, 0.0
    %v393 = vmax.f32 %v256, 0.0
    %v394 = vmax.f32 %v260, 0.0
    %v395 = vmax.f32 %v262, 0.0
    %v396 = vmax.f32 %v264, 0.0
    %v397 = vmax.f32 %v266, 0.0
    %v398 = vmax.f32 %v270, 0.0
    %v399 = vmax.f32 %v272, 0.0
    %v400 = vmax.f32 %v274, 0.0
    %v401 = vmax.f32 %v276, 0.0
    %v402 = vmax.f32 %v280, 0.0
    %v403 = vmax.f32 %v282, 0.0
    %v404 = vmax.f32 %v284, 0.0
    %v405 = vmax.f32 %v286, 0.0
    %v406 = vmax.f32 %v290, 0.0
    %v407 = vmax.f32 %v292, 0.0
    %v408 = vmax.f32 %v294, 0.0
    %v409 = vmax.f32 %v296, 0.0
    %v410 = vmax.f32 %v300, 0.0
    %v411 = vmax.f32 %v302, 0.0
    %v412 = vmax.f32 %v304, 0.0
    %v413 = vmax.f32 %v306, 0.0
    %v414 = vmax.f32 %v310, 0.0
    %v415 = vmax.f32 %v312, 0.0
    %v416 = vmax.f32 %v314, 0.0
    %v417 = vmax.f32 %v316, 0.0
    %v418 = vmax.f32 %v320, 0.0
    %v419 = vmax.f32 %v322, 0.0
    %v420 = vmax.f32 %v324, 0.0
    %v421 = vmax.f32 %v326, 0.0
    %v422 = vmax.f32 %v330, 0.0
    %v423 = vmax.f32 %v332, 0.0
    %v424 = vmax.f32 %v334, 0.0
    %v425 = vmax.f32 %v336, 0.0
    %v426 = vmax.f32 %v340, 0.0
    %v427 = vmax.f32 %v342, 0.0
    %v428 = vmax.f32 %v344, 0.0
    %v429 = vmax.f32 %v346, 0.0
    %v430 = vmax.f32 %v350, 0.0
    %v431 = vmax.f32 %v352, 0.0
    %v432 = vmax.f32 %v354, 0.0
    %v433 = vmax.f32 %v356, 0.0
    %v434 = vmax.f32 %v360, 0.0
    %v435 = vmax.f32 %v362, 0.0
    %v436 = vmax.f32 %v364, 0.0
    %v437 = vmax.f32 %v366, 0.0
    %v438 = vmax.f32 %v370, 0.0
    %v439 = vmax.f32 %v372, 0.0
    %v440 = vmax.f32 %v374, 0.0
    %v441 = vmax.f32 %v376, 0.0
    %v442 = vpack.c.bf16 %v380, %v378
    %v443 = vpack.c.bf16 %v381, %v379
    %v444 = vpack.c.bf16 %v384, %v382
    %v445 = vpack.c.bf16 %v385, %v383
    %v446 = vpack.c.bf16 %v388, %v386
    %v447 = vpack.c.bf16 %v389, %v387
    %v448 = vpack.c.bf16 %v392, %v390
    %v449 = vpack.c.bf16 %v393, %v391
    %v450 = vpack.c.bf16 %v396, %v394
    %v451 = vpack.c.bf16 %v397, %v395
    %v452 = vpack.c.bf16 %v400, %v398
    %v453 = vpack.c.bf16 %v401, %v399
    %v454 = vpack.c.bf16 %v404, %v402
    %v455 = vpack.c.bf16 %v405, %v403
    %v456 = vpack.c.bf16 %v408, %v406
    %v457 = vpack.c.bf16 %v409, %v407
    %v458 = vpack.c.bf16 %v412, %v410
    %v459 = vpack.c.bf16 %v413, %v411
    %v460 = vpack.c.bf16 %v416, %v414
    %v461 = vpack.c.bf16 %v417, %v415
    %v462 = vpack.c.bf16 %v420, %v418
    %v463 = vpack.c.bf16 %v421, %v419
    %v464 = vpack.c.bf16 %v424, %v422
    %v465 = vpack.c.bf16 %v425, %v423
    %v466 = vpack.c.bf16 %v428, %v426
    %v467 = vpack.c.bf16 %v429, %v427
    %v468 = vpack.c.bf16 %v432, %v430
    %v469 = vpack.c.bf16 %v433, %v431
    %v470 = vpack.c.bf16 %v436, %v434
    %v471 = vpack.c.bf16 %v437, %v435
    %v472 = vpack.c.bf16 %v440, %v438
    %v473 = vpack.c.bf16 %v441, %v439
    %v474 = vld [vmem:[%s3] sm:$0xf]
    %v475 = vld [vmem:[%s3 + $0x4] sm:$0xf]
    %v476 = vld [vmem:[%s3 + $0x8] sm:$0xf]
    %v477 = vld [vmem:[%s3 + $0xc] sm:$0xf]
    %v478 = vld [vmem:[%s3 + $0x10] sm:$0xf]
    %v479 = vld [vmem:[%s3 + $0x14] sm:$0xf]
    %v480 = vld [vmem:[%s3 + $0x18] sm:$0xf]
    %v481 = vld [vmem:[%s3 + $0x1c] sm:$0xf]
    %v482 = vld [vmem:[%s3 + $0x20] sm:$0xf]
    %v483 = vld [vmem:[%s3 + $0x24] sm:$0xf]
    %v484 = vld [vmem:[%s3 + $0x28] sm:$0xf]
    %v485 = vld [vmem:[%s3 + $0x2c] sm:$0xf]
    %v486 = vld [vmem:[%s3 + $0x30] sm:$0xf]
    %v487 = vld [vmem:[%s3 + $0x34] sm:$0xf]
    %v488 = vld [vmem:[%s3 + $0x38] sm:$0xf]
    %v489 = vld [vmem:[%s3 + $0x3c] sm:$0xf]
    %v490 = vld [vmem:[%s3 + $0x40] sm:$0xf]
    %v491 = vld [vmem:[%s3 + $0x44] sm:$0xf]
    %v492 = vld [vmem:[%s3 + $0x48] sm:$0xf]
    %v493 = vld [vmem:[%s3 + $0x4c] sm:$0xf]
    %v494 = vld [vmem:[%s3 + $0x50] sm:$0xf]
    %v495 = vld [vmem:[%s3 + $0x54] sm:$0xf]
    %v496 = vld [vmem:[%s3 + $0x58] sm:$0xf]
    %v497 = vld [vmem:[%s3 + $0x5c] sm:$0xf]
    %v498 = vld [vmem:[%s3 + $0x60] sm:$0xf]
    %v499 = vld [vmem:[%s3 + $0x64] sm:$0xf]
    %v500 = vld [vmem:[%s3 + $0x68] sm:$0xf]
    %v501 = vld [vmem:[%s3 + $0x6c] sm:$0xf]
    %v502 = vld [vmem:[%s3 + $0x70] sm:$0xf]
    %v503 = vld [vmem:[%s3 + $0x74] sm:$0xf]
    %v504 = vld [vmem:[%s3 + $0x78] sm:$0xf]
    %v505 = vld [vmem:[%s3 + $0x7c] sm:$0xf]
    %v506 = vld [vmem:[%s4] sm:$0x1]
    %v508 = vlaneseq
    %v509 = vshrl.u32 %v508, 7
    %v510 = vsub.s32 0, %v509
    %v511 = vrot.slane %v506, %v510
    %v545 = vunpack.c.l.b16 %v474
    %v546 = vunpack.c.l.b16 %v475
    %v547 = vunpack.c.l.b16 %v476
    %v548 = vunpack.c.l.b16 %v477
    %v549 = vunpack.c.l.b16 %v478
    %v550 = vunpack.c.l.b16 %v479
    %v551 = vunpack.c.l.b16 %v480
    %v552 = vunpack.c.l.b16 %v481
    %v553 = vunpack.c.l.b16 %v482
    %v554 = vunpack.c.l.b16 %v483
    %v555 = vunpack.c.l.b16 %v484
    %v556 = vunpack.c.l.b16 %v485
    %v557 = vunpack.c.l.b16 %v486
    %v558 = vunpack.c.l.b16 %v487
    %v559 = vunpack.c.l.b16 %v488
    %v560 = vunpack.c.l.b16 %v489
    %v561 = vunpack.c.l.b16 %v490
    %v562 = vunpack.c.l.b16 %v491
    %v563 = vunpack.c.l.b16 %v492
    %v564 = vunpack.c.l.b16 %v493
    %v565 = vunpack.c.l.b16 %v494
    %v566 = vunpack.c.l.b16 %v495
    %v567 = vunpack.c.l.b16 %v496
    %v568 = vunpack.c.l.b16 %v497
    %v569 = vunpack.c.l.b16 %v498
    %v570 = vunpack.c.l.b16 %v499
    %v571 = vunpack.c.l.b16 %v500
    %v572 = vunpack.c.l.b16 %v501
    %v573 = vunpack.c.l.b16 %v502
    %v574 = vunpack.c.l.b16 %v503
    %v575 = vunpack.c.l.b16 %v504
    %v576 = vunpack.c.l.b16 %v505
    %v577 = vpack.c.b16 %v546, %v545
    %v578 = vpack.c.b16 %v548, %v547
    %v579 = vpack.c.b16 %v550, %v549
    %v580 = vpack.c.b16 %v552, %v551
    %v581 = vpack.c.b16 %v554, %v553
    %v582 = vpack.c.b16 %v556, %v555
    %v583 = vpack.c.b16 %v558, %v557
    %v584 = vpack.c.b16 %v560, %v559
    %v585 = vpack.c.b16 %v562, %v561
    %v586 = vpack.c.b16 %v564, %v563
    %v587 = vpack.c.b16 %v566, %v565
    %v588 = vpack.c.b16 %v568, %v567
    %v589 = vpack.c.b16 %v570, %v569
    %v590 = vpack.c.b16 %v572, %v571
    %v591 = vpack.c.b16 %v574, %v573
    %v592 = vpack.c.b16 %v576, %v575
    %609 = vmatprep.subr.bf16.mxu0 0
    %610 = vmatpush1.bf16.msra.mxu0 %v577
    %611 = vmatprep.subr.bf16.mxu0 0
    %612 = vmatpush1.bf16.msra.mxu0 %v578
    %613 = vmatprep.subr.bf16.mxu0 0
    %614 = vmatpush1.bf16.msra.mxu0 %v579
    %615 = vmatprep.subr.bf16.mxu0 0
    %616 = vmatpush1.bf16.msra.mxu0 %v580
    %617 = vmatprep.subr.bf16.mxu0 0
    %618 = vmatpush1.bf16.msra.mxu0 %v581
    %619 = vmatprep.subr.bf16.mxu0 0
    %620 = vmatpush1.bf16.msra.mxu0 %v582
    %621 = vmatprep.subr.bf16.mxu0 0
    %622 = vmatpush1.bf16.msra.mxu0 %v583
    %623 = vmatprep.subr.bf16.mxu0 0
    %624 = vmatpush1.bf16.msra.mxu0 %v584
    %625 = vmatprep.subr.bf16.mxu0 0
    %626 = vmatpush1.bf16.msra.mxu0 %v585
    %627 = vmatprep.subr.bf16.mxu0 0
    %628 = vmatpush1.bf16.msra.mxu0 %v586
    %629 = vmatprep.subr.bf16.mxu0 0
    %630 = vmatpush1.bf16.msra.mxu0 %v587
    %631 = vmatprep.subr.bf16.mxu0 0
    %632 = vmatpush1.bf16.msra.mxu0 %v588
    %633 = vmatprep.subr.bf16.mxu0 0
    %634 = vmatpush1.bf16.msra.mxu0 %v589
    %635 = vmatprep.subr.bf16.mxu0 0
    %636 = vmatpush1.bf16.msra.mxu0 %v590
    %637 = vmatprep.subr.bf16.mxu0 0
    %638 = vmatpush1.bf16.msra.mxu0 %v591
    %639 = vmatprep.subr.bf16.mxu0 0
    %640 = vmatpush1.bf16.msra.mxu0 %v592
    %641 = vmatprep.mubr.bf16.mxu0 %v443
    %642 = vmatmul.mubr.bf16.gmra.mrb[0].mxu0 %v442
    %v643 = vpop.f32.mrb[0].mxu0
    %v644 = vadd.f32 %v511, %v643
    %v645 = vpop.f32.mrb[0].mxu0
    %v646 = vpop.f32.mrb[0].mxu0
    %v647 = vadd.f32 %v511, %v646
    %v648 = vpop.f32.mrb[0].mxu0
    %649 = vmatprep.mubr.bf16.mxu0 %v445
    %650 = vmatmul.mubr.bf16.gmra.mrb[0].mxu0 %v444
    %v651 = vpop.f32.mrb[0].mxu0
    %v652 = vadd.f32 %v511, %v651
    %v653 = vpop.f32.mrb[0].mxu0
    %v654 = vpop.f32.mrb[0].mxu0
    %v655 = vadd.f32 %v511, %v654
    %v656 = vpop.f32.mrb[0].mxu0
    %657 = vmatprep.mubr.bf16.mxu0 %v447
    %658 = vmatmul.mubr.bf16.gmra.mrb[0].mxu0 %v446
    %v659 = vpop.f32.mrb[0].mxu0
    %v660 = vadd.f32 %v511, %v659
    %v661 = vpop.f32.mrb[0].mxu0
    %v662 = vpop.f32.mrb[0].mxu0
    %v663 = vadd.f32 %v511, %v662
    %v664 = vpop.f32.mrb[0].mxu0
    %665 = vmatprep.mubr.bf16.mxu0 %v449
    %666 = vmatmul.mubr.bf16.gmra.mrb[0].mxu0 %v448
    %v667 = vpop.f32.mrb[0].mxu0
    %v668 = vadd.f32 %v511, %v667
    %v669 = vpop.f32.mrb[0].mxu0
    %v670 = vpop.f32.mrb[0].mxu0
    %v671 = vadd.f32 %v511, %v670
    %v672 = vpop.f32.mrb[0].mxu0
    %673 = vmatprep.mubr.bf16.mxu0 %v451
    %674 = vmatmul.mubr.bf16.gmra.mrb[0].mxu0 %v450
    %v675 = vpop.f32.mrb[0].mxu0
    %v676 = vadd.f32 %v511, %v675
    %v677 = vpop.f32.mrb[0].mxu0
    %v678 = vpop.f32.mrb[0].mxu0
    %v679 = vadd.f32 %v511, %v678
    %v680 = vpop.f32.mrb[0].mxu0
    %681 = vmatprep.mubr.bf16.mxu0 %v453
    %682 = vmatmul.mubr.bf16.gmra.mrb[0].mxu0 %v452
    %v683 = vpop.f32.mrb[0].mxu0
    %v684 = vadd.f32 %v511, %v683
    %v685 = vpop.f32.mrb[0].mxu0
    %v686 = vpop.f32.mrb[0].mxu0
    %v687 = vadd.f32 %v511, %v686
    %v688 = vpop.f32.mrb[0].mxu0
    %689 = vmatprep.mubr.bf16.mxu0 %v455
    %690 = vmatmul.mubr.bf16.gmra.mrb[0].mxu0 %v454
    %v691 = vpop.f32.mrb[0].mxu0
    %v692 = vadd.f32 %v511, %v691
    %v693 = vpop.f32.mrb[0].mxu0
    %v694 = vpop.f32.mrb[0].mxu0
    %v695 = vadd.f32 %v511, %v694
    %v696 = vpop.f32.mrb[0].mxu0
    %697 = vmatprep.mubr.bf16.mxu0 %v457
    %698 = vmatmul.mubr.bf16.gmra.mrb[0].mxu0 %v456
    %v699 = vpop.f32.mrb[0].mxu0
    %v700 = vadd.f32 %v511, %v699
    %v701 = vpop.f32.mrb[0].mxu0
    %v702 = vpop.f32.mrb[0].mxu0
    %v703 = vadd.f32 %v511, %v702
    %v704 = vpop.f32.mrb[0].mxu0
    %705 = vmatprep.mubr.bf16.mxu0 %v459
    %706 = vmatmul.mubr.bf16.gmra.mrb[0].mxu0 %v458
    %v707 = vpop.f32.mrb[0].mxu0
    %v708 = vadd.f32 %v511, %v707
    %v709 = vpop.f32.mrb[0].mxu0
    %v710 = vpop.f32.mrb[0].mxu0
    %v711 = vadd.f32 %v511, %v710
    %v712 = vpop.f32.mrb[0].mxu0
    %713 = vmatprep.mubr.bf16.mxu0 %v461
    %714 = vmatmul.mubr.bf16.gmra.mrb[0].mxu0 %v460
    %v715 = vpop.f32.mrb[0].mxu0
    %v716 = vadd.f32 %v511, %v715
    %v717 = vpop.f32.mrb[0].mxu0
    %v718 = vpop.f32.mrb[0].mxu0
    %v719 = vadd.f32 %v511, %v718
    %v720 = vpop.f32.mrb[0].mxu0
    %721 = vmatprep.mubr.bf16.mxu0 %v463
    %722 = vmatmul.mubr.bf16.gmra.mrb[0].mxu0 %v462
    %v723 = vpop.f32.mrb[0].mxu0
    %v724 = vadd.f32 %v511, %v723
    %v725 = vpop.f32.mrb[0].mxu0
    %v726 = vpop.f32.mrb[0].mxu0
    %v727 = vadd.f32 %v511, %v726
    %v728 = vpop.f32.mrb[0].mxu0
    %729 = vmatprep.mubr.bf16.mxu0 %v465
    %730 = vmatmul.mubr.bf16.gmra.mrb[0].mxu0 %v464
    %v731 = vpop.f32.mrb[0].mxu0
    %v732 = vadd.f32 %v511, %v731
    %v733 = vpop.f32.mrb[0].mxu0
    %v734 = vpop.f32.mrb[0].mxu0
    %v735 = vadd.f32 %v511, %v734
    %v736 = vpop.f32.mrb[0].mxu0
    %737 = vmatprep.mubr.bf16.mxu0 %v467
    %738 = vmatmul.mubr.bf16.gmra.mrb[0].mxu0 %v466
    %v739 = vpop.f32.mrb[0].mxu0
    %v740 = vadd.f32 %v511, %v739
    %v741 = vpop.f32.mrb[0].mxu0
    %v742 = vpop.f32.mrb[0].mxu0
    %v743 = vadd.f32 %v511, %v742
    %v744 = vpop.f32.mrb[0].mxu0
    %745 = vmatprep.mubr.bf16.mxu0 %v469
    %746 = vmatmul.mubr.bf16.gmra.mrb[0].mxu0 %v468
    %v747 = vpop.f32.mrb[0].mxu0
    %v748 = vadd.f32 %v511, %v747
    %v749 = vpop.f32.mrb[0].mxu0
    %v750 = vpop.f32.mrb[0].mxu0
    %v751 = vadd.f32 %v511, %v750
    %v752 = vpop.f32.mrb[0].mxu0
    %753 = vmatprep.mubr.bf16.mxu0 %v471
    %754 = vmatmul.mubr.bf16.gmra.mrb[0].mxu0 %v470
    %v755 = vpop.f32.mrb[0].mxu0
    %v756 = vadd.f32 %v511, %v755
    %v757 = vpop.f32.mrb[0].mxu0
    %v758 = vpop.f32.mrb[0].mxu0
    %v759 = vadd.f32 %v511, %v758
    %v760 = vpop.f32.mrb[0].mxu0
    %761 = vmatprep.mubr.bf16.mxu0 %v473
    %762 = vmatmul.mubr.bf16.gmra.mrb[0].mxu0 %v472
    %v763 = vpop.f32.mrb[0].mxu0
    %v764 = vadd.f32 %v511, %v763
    %v765 = vpop.f32.mrb[0].mxu0
    %v766 = vpop.f32.mrb[0].mxu0
    %v767 = vadd.f32 %v511, %v766
    %v768 = vpop.f32.mrb[0].mxu0
    %769 = vdwg.mxu0
    %v770 = vmax.f32 %v644, 0.0
    %v771 = vmax.f32 %v647, 0.0
    %v772 = vmax.f32 %v652, 0.0
    %v773 = vmax.f32 %v655, 0.0
    %v774 = vmax.f32 %v660, 0.0
    %v775 = vmax.f32 %v663, 0.0
    %v776 = vmax.f32 %v668, 0.0
    %v777 = vmax.f32 %v671, 0.0
    %v778 = vmax.f32 %v676, 0.0
    %v779 = vmax.f32 %v679, 0.0
    %v780 = vmax.f32 %v684, 0.0
    %v781 = vmax.f32 %v687, 0.0
    %v782 = vmax.f32 %v692, 0.0
    %v783 = vmax.f32 %v695, 0.0
    %v784 = vmax.f32 %v700, 0.0
    %v785 = vmax.f32 %v703, 0.0
    %v786 = vmax.f32 %v708, 0.0
    %v787 = vmax.f32 %v711, 0.0
    %v788 = vmax.f32 %v716, 0.0
    %v789 = vmax.f32 %v719, 0.0
    %v790 = vmax.f32 %v724, 0.0
    %v791 = vmax.f32 %v727, 0.0
    %v792 = vmax.f32 %v732, 0.0
    %v793 = vmax.f32 %v735, 0.0
    %v794 = vmax.f32 %v740, 0.0
    %v795 = vmax.f32 %v743, 0.0
    %v796 = vmax.f32 %v748, 0.0
    %v797 = vmax.f32 %v751, 0.0
    %v798 = vmax.f32 %v756, 0.0
    %v799 = vmax.f32 %v759, 0.0
    %v800 = vmax.f32 %v764, 0.0
    %v801 = vmax.f32 %v767, 0.0
    %v802 = vpack.c.bf16 %v771, %v770
    %v803 = vpack.c.bf16 %v773, %v772
    %v804 = vpack.c.bf16 %v775, %v774
    %v805 = vpack.c.bf16 %v777, %v776
    %v806 = vpack.c.bf16 %v779, %v778
    %v807 = vpack.c.bf16 %v781, %v780
    %v808 = vpack.c.bf16 %v783, %v782
    %v809 = vpack.c.bf16 %v785, %v784
    %v810 = vpack.c.bf16 %v787, %v786
    %v811 = vpack.c.bf16 %v789, %v788
    %v812 = vpack.c.bf16 %v791, %v790
    %v813 = vpack.c.bf16 %v793, %v792
    %v814 = vpack.c.bf16 %v795, %v794
    %v815 = vpack.c.bf16 %v797, %v796
    %v816 = vpack.c.bf16 %v799, %v798
    %v817 = vpack.c.bf16 %v801, %v800
    %v818 = vld [vmem:[%s5] sm:$0xf]
    %v819 = vld [vmem:[%s5 + $0x4] sm:$0xf]
    %v820 = vld [vmem:[%s5 + $0x8] sm:$0xf]
    %v821 = vld [vmem:[%s5 + $0xc] sm:$0xf]
    %v822 = vld [vmem:[%s5 + $0x10] sm:$0xf]
    %v823 = vld [vmem:[%s5 + $0x14] sm:$0xf]
    %v824 = vld [vmem:[%s5 + $0x18] sm:$0xf]
    %v825 = vld [vmem:[%s5 + $0x1c] sm:$0xf]
    %v826 = vld [vmem:[%s5 + $0x20] sm:$0xf]
    %v827 = vld [vmem:[%s5 + $0x24] sm:$0xf]
    %v828 = vld [vmem:[%s5 + $0x28] sm:$0xf]
    %v829 = vld [vmem:[%s5 + $0x2c] sm:$0xf]
    %v830 = vld [vmem:[%s5 + $0x30] sm:$0xf]
    %v831 = vld [vmem:[%s5 + $0x34] sm:$0xf]
    %v832 = vld [vmem:[%s5 + $0x38] sm:$0xf]
    %v833 = vld [vmem:[%s5 + $0x3c] sm:$0xf]
    %v834 = vld [vmem:[%s6] sm:$0x1]
    %v836 = vlaneseq
    %v837 = vshrl.u32 %v836, 7
    %v838 = vsub.s32 0, %v837
    %v839 = vrot.slane %v834, %v838
    %v857 = vunpack.c.l.b16 %v818
    %v858 = vunpack.c.l.b16 %v819
    %v859 = vunpack.c.l.b16 %v820
    %v860 = vunpack.c.l.b16 %v821
    %v861 = vunpack.c.l.b16 %v822
    %v862 = vunpack.c.l.b16 %v823
    %v863 = vunpack.c.l.b16 %v824
    %v864 = vunpack.c.l.b16 %v825
    %v865 = vunpack.c.l.b16 %v826
    %v866 = vunpack.c.l.b16 %v827
    %v867 = vunpack.c.l.b16 %v828
    %v868 = vunpack.c.l.b16 %v829
    %v869 = vunpack.c.l.b16 %v830
    %v870 = vunpack.c.l.b16 %v831
    %v871 = vunpack.c.l.b16 %v832
    %v872 = vunpack.c.l.b16 %v833
    %v873 = vpack.c.b16 %v858, %v857
    %v874 = vpack.c.b16 %v860, %v859
    %v875 = vpack.c.b16 %v862, %v861
    %v876 = vpack.c.b16 %v864, %v863
    %v877 = vpack.c.b16 %v866, %v865
    %v878 = vpack.c.b16 %v868, %v867
    %v879 = vpack.c.b16 %v870, %v869
    %v880 = vpack.c.b16 %v872, %v871
    %889 = vmatprep.subr.bf16.mxu0 0
    %890 = vmatpush1.bf16.msra.mxu0 %v873
    %891 = vmatprep.subr.bf16.mxu0 0
    %892 = vmatpush1.bf16.msra.mxu0 %v874
    %893 = vmatprep.subr.bf16.mxu0 0
    %894 = vmatpush1.bf16.msra.mxu0 %v875
    %895 = vmatprep.subr.bf16.mxu0 0
    %896 = vmatpush1.bf16.msra.mxu0 %v876
    %897 = vmatprep.subr.bf16.mxu0 0
    %898 = vmatpush1.bf16.msra.mxu0 %v877
    %899 = vmatprep.subr.bf16.mxu0 0
    %900 = vmatpush1.bf16.msra.mxu0 %v878
    %901 = vmatprep.subr.bf16.mxu0 0
    %902 = vmatpush1.bf16.msra.mxu0 %v879
    %903 = vmatprep.subr.bf16.mxu0 0
    %904 = vmatpush1.bf16.msra.mxu0 %v880
    %905 = vmatprep.subr.bf16.mxu0 0
    %906 = vmatpush1.bf16.msra.mxu0 0
    %907 = vmatprep.subr.bf16.mxu0 0
    %908 = vmatpush1.bf16.msra.mxu0 0
    %909 = vmatprep.subr.bf16.mxu0 0
    %910 = vmatpush1.bf16.msra.mxu0 0
    %911 = vmatprep.subr.bf16.mxu0 0
    %912 = vmatpush1.bf16.msra.mxu0 0
    %913 = vmatprep.subr.bf16.mxu0 0
    %914 = vmatpush1.bf16.msra.mxu0 0
    %915 = vmatprep.subr.bf16.mxu0 0
    %916 = vmatpush1.bf16.msra.mxu0 0
    %917 = vmatprep.subr.bf16.mxu0 0
    %918 = vmatpush1.bf16.msra.mxu0 0
    %919 = vmatprep.subr.bf16.mxu0 0
    %920 = vmatpush1.bf16.msra.mxu0 0
    %921 = vmatprep.mubr.bf16.mxu0 0
    %922 = vmatmul.mubr.bf16.gmra.mrb[0].mxu0 %v802
    %v923 = vpop.f32.mrb[0].mxu0
    %v924 = vadd.f32 %v839, %v923
    %v925 = vpop.f32.mrb[0].mxu0
    %v926 = vpop.f32.mrb[0].mxu0
    %v927 = vadd.f32 %v839, %v926
    %v928 = vpop.f32.mrb[0].mxu0
    %929 = vmatprep.mubr.bf16.mxu0 0
    %930 = vmatmul.mubr.bf16.gmra.mrb[0].mxu0 %v803
    %v931 = vpop.f32.mrb[0].mxu0
    %v932 = vadd.f32 %v839, %v931
    %v933 = vpop.f32.mrb[0].mxu0
    %v934 = vpop.f32.mrb[0].mxu0
    %v935 = vadd.f32 %v839, %v934
    %v936 = vpop.f32.mrb[0].mxu0
    %937 = vmatprep.mubr.bf16.mxu0 0
    %938 = vmatmul.mubr.bf16.gmra.mrb[0].mxu0 %v804
    %v939 = vpop.f32.mrb[0].mxu0
    %v940 = vadd.f32 %v839, %v939
    %v941 = vpop.f32.mrb[0].mxu0
    %v942 = vpop.f32.mrb[0].mxu0
    %v943 = vadd.f32 %v839, %v942
    %v944 = vpop.f32.mrb[0].mxu0
    %945 = vmatprep.mubr.bf16.mxu0 0
    %946 = vmatmul.mubr.bf16.gmra.mrb[0].mxu0 %v805
    %v947 = vpop.f32.mrb[0].mxu0
    %v948 = vadd.f32 %v839, %v947
    %v949 = vpop.f32.mrb[0].mxu0
    %v950 = vpop.f32.mrb[0].mxu0
    %v951 = vadd.f32 %v839, %v950
    %v952 = vpop.f32.mrb[0].mxu0
    %953 = vmatprep.mubr.bf16.mxu0 0
    %954 = vmatmul.mubr.bf16.gmra.mrb[0].mxu0 %v806
    %v955 = vpop.f32.mrb[0].mxu0
    %v956 = vadd.f32 %v839, %v955
    %v957 = vpop.f32.mrb[0].mxu0
    %v958 = vpop.f32.mrb[0].mxu0
    %v959 = vadd.f32 %v839, %v958
    %v960 = vpop.f32.mrb[0].mxu0
    %961 = vmatprep.mubr.bf16.mxu0 0
    %962 = vmatmul.mubr.bf16.gmra.mrb[0].mxu0 %v807
    %v963 = vpop.f32.mrb[0].mxu0
    %v964 = vadd.f32 %v839, %v963
    %v965 = vpop.f32.mrb[0].mxu0
    %v966 = vpop.f32.mrb[0].mxu0
    %v967 = vadd.f32 %v839, %v966
    %v968 = vpop.f32.mrb[0].mxu0
    %969 = vmatprep.mubr.bf16.mxu0 0
    %970 = vmatmul.mubr.bf16.gmra.mrb[0].mxu0 %v808
    %v971 = vpop.f32.mrb[0].mxu0
    %v972 = vadd.f32 %v839, %v971
    %v973 = vpop.f32.mrb[0].mxu0
    %v974 = vpop.f32.mrb[0].mxu0
    %v975 = vadd.f32 %v839, %v974
    %v976 = vpop.f32.mrb[0].mxu0
    %977 = vmatprep.mubr.bf16.mxu0 0
    %978 = vmatmul.mubr.bf16.gmra.mrb[0].mxu0 %v809
    %v979 = vpop.f32.mrb[0].mxu0
    %v980 = vadd.f32 %v839, %v979
    %v981 = vpop.f32.mrb[0].mxu0
    %v982 = vpop.f32.mrb[0].mxu0
    %v983 = vadd.f32 %v839, %v982
    %v984 = vpop.f32.mrb[0].mxu0
    %985 = vmatprep.mubr.bf16.mxu0 0
    %986 = vmatmul.mubr.bf16.gmra.mrb[0].mxu0 %v810
    %v987 = vpop.f32.mrb[0].mxu0
    %v988 = vadd.f32 %v839, %v987
    %v989 = vpop.f32.mrb[0].mxu0
    %v990 = vpop.f32.mrb[0].mxu0
    %v991 = vadd.f32 %v839, %v990
    %v992 = vpop.f32.mrb[0].mxu0
    %993 = vmatprep.mubr.bf16.mxu0 0
    %994 = vmatmul.mubr.bf16.gmra.mrb[0].mxu0 %v811
    %v995 = vpop.f32.mrb[0].mxu0
    %v996 = vadd.f32 %v839, %v995
    %v997 = vpop.f32.mrb[0].mxu0
    %v998 = vpop.f32.mrb[0].mxu0
    %v999 = vadd.f32 %v839, %v998
    %v1000 = vpop.f32.mrb[0].mxu0
    %1001 = vmatprep.mubr.bf16.mxu0 0
    %1002 = vmatmul.mubr.bf16.gmra.mrb[0].mxu0 %v812
    %v1003 = vpop.f32.mrb[0].mxu0
    %v1004 = vadd.f32 %v839, %v1003
    %v1005 = vpop.f32.mrb[0].mxu0
    %v1006 = vpop.f32.mrb[0].mxu0
    %v1007 = vadd.f32 %v839, %v1006
    %v1008 = vpop.f32.mrb[0].mxu0
    %1009 = vmatprep.mubr.bf16.mxu0 0
    %1010 = vmatmul.mubr.bf16.gmra.mrb[0].mxu0 %v813
    %v1011 = vpop.f32.mrb[0].mxu0
    %v1012 = vadd.f32 %v839, %v1011
    %v1013 = vpop.f32.mrb[0].mxu0
    %v1014 = vpop.f32.mrb[0].mxu0
    %v1015 = vadd.f32 %v839, %v1014
    %v1016 = vpop.f32.mrb[0].mxu0
    %1017 = vmatprep.mubr.bf16.mxu0 0
    %1018 = vmatmul.mubr.bf16.gmra.mrb[0].mxu0 %v814
    %v1019 = vpop.f32.mrb[0].mxu0
    %v1020 = vadd.f32 %v839, %v1019
    %v1021 = vpop.f32.mrb[0].mxu0
    %v1022 = vpop.f32.mrb[0].mxu0
    %v1023 = vadd.f32 %v839, %v1022
    %v1024 = vpop.f32.mrb[0].mxu0
    %1025 = vmatprep.mubr.bf16.mxu0 0
    %1026 = vmatmul.mubr.bf16.gmra.mrb[0].mxu0 %v815
    %v1027 = vpop.f32.mrb[0].mxu0
    %v1028 = vadd.f32 %v839, %v1027
    %v1029 = vpop.f32.mrb[0].mxu0
    %v1030 = vpop.f32.mrb[0].mxu0
    %v1031 = vadd.f32 %v839, %v1030
    %v1032 = vpop.f32.mrb[0].mxu0
    %1033 = vmatprep.mubr.bf16.mxu0 0
    %1034 = vmatmul.mubr.bf16.gmra.mrb[0].mxu0 %v816
    %v1035 = vpop.f32.mrb[0].mxu0
    %v1036 = vadd.f32 %v839, %v1035
    %v1037 = vpop.f32.mrb[0].mxu0
    %v1038 = vpop.f32.mrb[0].mxu0
    %v1039 = vadd.f32 %v839, %v1038
    %v1040 = vpop.f32.mrb[0].mxu0
    %1041 = vmatprep.mubr.bf16.mxu0 0
    %1042 = vmatmul.mubr.bf16.gmra.mrb[0].mxu0 %v817
    %v1043 = vpop.f32.mrb[0].mxu0
    %v1044 = vadd.f32 %v839, %v1043
    %v1045 = vpop.f32.mrb[0].mxu0
    %v1046 = vpop.f32.mrb[0].mxu0
    %v1047 = vadd.f32 %v839, %v1046
    %v1048 = vpop.f32.mrb[0].mxu0
    %1049 = vdwg.mxu0
    %1050 = vst [vmem:[#allocation2] sm:$0xff] %v924
    %1051 = vst [vmem:[#allocation2 + $0x8] sm:$0xff] %v927
    %1052 = vst [vmem:[#allocation2 + $0x10] sm:$0xff] %v932
    %1053 = vst [vmem:[#allocation2 + $0x18] sm:$0xff] %v935
    %1054 = vst [vmem:[#allocation2 + $0x20] sm:$0xff] %v940
    %1055 = vst [vmem:[#allocation2 + $0x28] sm:$0xff] %v943
    %1056 = vst [vmem:[#allocation2 + $0x30] sm:$0xff] %v948
    %1057 = vst [vmem:[#allocation2 + $0x38] sm:$0xff] %v951
    %1058 = vst [vmem:[#allocation2 + $0x40] sm:$0xff] %v956
    %1059 = vst [vmem:[#allocation2 + $0x48] sm:$0xff] %v959
    %1060 = vst [vmem:[#allocation2 + $0x50] sm:$0xff] %v964
    %1061 = vst [vmem:[#allocation2 + $0x58] sm:$0xff] %v967
    %1062 = vst [vmem:[#allocation2 + $0x60] sm:$0xff] %v972
    %1063 = vst [vmem:[#allocation2 + $0x68] sm:$0xff] %v975
    %1064 = vst [vmem:[#allocation2 + $0x70] sm:$0xff] %v980
    %1065 = vst [vmem:[#allocation2 + $0x78] sm:$0xff] %v983
    %1066 = vst [vmem:[#allocation2 + $0x80] sm:$0xff] %v988
    %1067 = vst [vmem:[#allocation2 + $0x88] sm:$0xff] %v991
    %1068 = vst [vmem:[#allocation2 + $0x90] sm:$0xff] %v996
    %1069 = vst [vmem:[#allocation2 + $0x98] sm:$0xff] %v999
    %1070 = vst [vmem:[#allocation2 + $0xa0] sm:$0xff] %v1004
    %1071 = vst [vmem:[#allocation2 + $0xa8] sm:$0xff] %v1007
    %1072 = vst [vmem:[#allocation2 + $0xb0] sm:$0xff] %v1012
    %1073 = vst [vmem:[#allocation2 + $0xb8] sm:$0xff] %v1015
    %1074 = vst [vmem:[#allocation2 + $0xc0] sm:$0xff] %v1020
    %1075 = vst [vmem:[#allocation2 + $0xc8] sm:$0xff] %v1023
    %1076 = vst [vmem:[#allocation2 + $0xd0] sm:$0xff] %v1028
    %1077 = vst [vmem:[#allocation2 + $0xd8] sm:$0xff] %v1031
    %1078 = vst [vmem:[#allocation2 + $0xe0] sm:$0xff] %v1036
    %1079 = vst [vmem:[#allocation2 + $0xe8] sm:$0xff] %v1039
    %1080 = vst [vmem:[#allocation2 + $0xf0] sm:$0xff] %v1044
    %1081 = vst [vmem:[#allocation2 + $0xf8] sm:$0xff] %v1047
    // Predicated region
    $region30: #{tpu_custom_call.1} parent=1 // pred_check
      _
    $region31: #{tpu_custom_call.1} parent=1 // pred_check_branch
      %1083 = sbr.rel (0) target = $region33
    $region32: #{tpu_custom_call.1} parent=1 // pred_region
      %s1085 = ssub.s32 4096, 4096
      %1086 = vsyncadd [#allocation3], %s1085
      %s1087 = sshll.u32 [#allocation2], 4
      %s1088 = int_to_ptr.vmem [resolvable:$true] %s1087
      %1093 = dma.vmem_to_hbm [thread:$0]  %s1088, 4096, %s7, [#allocation3], 128, 128, 8
    $region33: #{tpu_custom_call.1} parent=1 // pred_fallthru
      _
    // Predicated region
    $region34: #{tpu_custom_call.1} parent=1 // pred_check
      _
    $region35: #{tpu_custom_call.1} parent=1 // pred_check_branch
      %1095 = sbr.rel (0) target = $region37
    $region36: #{tpu_custom_call.1} parent=1 // pred_region
      %1096 = dma.done [#allocation3], 4096
    $region37: #{tpu_custom_call.1} parent=1 // pred_fallthru
      _
    %1097 = vsyncpa [#allocation3], 1

</llo_original>
